<compile_context>
chip_gen: v7x
topology: tpu7x:2x2x1
jax: 0.10.0
libtpu: 0.0.40
codegen_flags: <defaults>
</compile_context>

<pallas_src>
import functools

import jax
import jax.numpy as jnp
from jax.experimental import pallas as pl
from jax.experimental.pallas import tpu as pltpu


# ---------------------------------------------------------------------------
# Kernel
# ---------------------------------------------------------------------------
def _conditioner_kernel(mask_ref, *refs, num_embedders, num_variants, batch):
    """mask_ref: SMEM int32[(V*E*B,)] flattened keep masks (1 = keep, 0 = dropped).
    refs = (tok_ref_0, ..., tok_ref_{E-1}, out_ref_0, ..., out_ref_{V-1})
      tok_ref_e : VMEM (B, tr, 128)      this embedder's lane-packed row tile
      out_ref_v : VMEM (B, E, tr, 128)   variant v's slice of the concat output
    """
    tok_refs = refs[:num_embedders]
    out_refs = refs[num_embedders:]
    for e in range(num_embedders):
        tok = tok_refs[e][...]  # (B, tr, 128): one load stream per embedder
        dtype = tok.dtype
        for v in range(num_variants):
            base = (v * num_embedders + e) * batch
            for b in range(batch):
                scale = mask_ref[base + b].astype(dtype)  # SMEM scalar -> splat
                out_refs[v][b, e, :, :] = tok[b] * scale  # full-width (128) store


# ---------------------------------------------------------------------------
# Tiling / VMEM budgeting
# ---------------------------------------------------------------------------
def _vmem_budget_and_limit():
    """Per-TensorCore VMEM working-set budget + scoped vmem_limit_bytes."""
    try:
        cap = int(pltpu.get_tpu_info().vmem_capacity_bytes)
        if cap <= 0:
            raise ValueError("bad vmem capacity")
    except Exception:
        cap = 64 * 1024 * 1024  # conservative default (v7x per-TC)
    budget = cap // 2  # v5e/v6e: 64 MiB, v7x: 32 MiB working set target
    limit = max(32 << 20, min(cap * 3 // 4, budget + (24 << 20)))
    return budget, limit


def _choose_row_tile(R, E, B, V, itemsize, vmem_budget_bytes):
    """Largest sublane-aligned packed-row tile whose double-buffered in+out blocks
    fit the per-core VMEM budget.  No divisor requirement: grid uses cdiv."""
    sublane = max(8, 32 // max(itemsize, 1))  # 8 for f32, 16 for bf16, 32 for 8-bit
    # Per packed row, per pipeline step: E input blocks + V output slabs, x2 buffers.
    per_row = 2 * (E + V * E) * B * 128 * itemsize
    max_rows = vmem_budget_bytes // max(per_row, 1)
    if R <= max_rows:
        return R  # whole row axis fits: single grid step
    tr = max(sublane, (max_rows // sublane) * sublane)
    return R if tr >= R else tr


# ---------------------------------------------------------------------------
# Wrapper
# ---------------------------------------------------------------------------
@jax.jit
def _conditioner_call(keep_masks, *tokens):
    """keep_masks: (V, E, B) keep masks (1 keep / 0 drop) for V output variants.
    tokens: E arrays, each (B, S, D), sharing shape and dtype, with (S*D) % 128 == 0.
    Returns a tuple of V arrays, each (B, E*S, D) = concat of masked tokens along seq."""
    V, E, B = keep_masks.shape
    assert E == len(tokens), "one keep-mask row per embedder"
    Bt, S, D = tokens[0].shape
    assert Bt == B
    dtype = tokens[0].dtype
    itemsize = jnp.dtype(dtype).itemsize

    R = (S * D) // 128
    packed = [t.reshape(B, R, 128) for t in tokens]  # contiguous, lane-dense view

    budget, vmem_limit = _vmem_budget_and_limit()
    tr = _choose_row_tile(R, E, B, V, itemsize, budget)
    grid = (pl.cdiv(R, tr),)

    flat_mask = keep_masks.reshape(-1).astype(jnp.int32)  # tiny; lives in SMEM

    kernel = functools.partial(
        _conditioner_kernel, num_embedders=E, num_variants=V, batch=B
    )
    # index_maps receive the scalar-prefetch ref as a trailing positional arg.
    in_specs = [pl.BlockSpec((B, tr, 128), lambda t, m: (0, t, 0)) for _ in range(E)]
    out_specs = [
        pl.BlockSpec((B, E, tr, 128), lambda t, m: (0, 0, t, 0)) for _ in range(V)
    ]
    out_shapes = [jax.ShapeDtypeStruct((B, E, R, 128), dtype) for _ in range(V)]

    bytes_accessed = (E + V * E) * B * R * 128 * itemsize

    outs = pl.pallas_call(
        kernel,
        out_shape=out_shapes,
        grid_spec=pltpu.PrefetchScalarGridSpec(
            num_scalar_prefetch=1,
            grid=grid,
            in_specs=in_specs,
            out_specs=out_specs,
        ),
        compiler_params=pltpu.CompilerParams(
            dimension_semantics=("parallel",),  # disjoint row tiles -> megacore-shardable
            vmem_limit_bytes=int(vmem_limit),
        ),
        cost_estimate=pl.CostEstimate(
            flops=int(V * E * B * R * 128),
            transcendentals=0,
            bytes_accessed=int(bytes_accessed),
        ),
    )(flat_mask, *packed)

    # (B, E, R, 128) -> (B, E*S, D) is a contiguous reshape: KEY2DIM concat for free.
    return tuple(o.reshape(B, E * S, D) for o in outs)


def _conditioner_xla(tokens, keep_masks):
    """Plain-XLA fallback (ragged shapes / dtypes, or S*D not a multiple of 128)."""
    V = keep_masks.shape[0]
    outs = []
    for v in range(V):
        pieces = [
            tok * keep_masks[v, e, :, None, None].astype(tok.dtype)
            for e, tok in enumerate(tokens)
        ]
        outs.append(jnp.concatenate(pieces, axis=1))
    return tuple(outs)


def conditioner_pallas(token_list, keep_masks):
    """token_list: list of E arrays (B, S, D); keep_masks: (V, E, B)."""
    keep_masks = jnp.asarray(keep_masks)
    shapes = {(tuple(t.shape), jnp.dtype(t.dtype)) for t in token_list}
    B, S, D = token_list[0].shape
    if len(shapes) != 1 or (S * D) % 128 != 0:
        # TODO(synk): ragged seq lengths / mixed dtypes / non-lane-packable hidden
        # sizes fall back to plain XLA masked concat instead of the Pallas kernel.
        return list(_conditioner_xla(token_list, keep_masks))
    return list(_conditioner_call(keep_masks.astype(jnp.int32), *token_list))


# ---------------------------------------------------------------------------
# Module mirrors
# ---------------------------------------------------------------------------
class TextAttrJAX:
    """JAX mirror of TextAttr: identity embedder keyed by a text-embedding tensor."""

    def __init__(self, input_key, dropout_rate=0.0):
        self.input_key = input_key
        self.dropout_rate = dropout_rate
        self.is_trainable = False  # TextAttr has no params


class GeneralConditionerJAX:
    """JAX mirror of GeneralConditioner restricted to TextAttr embedders.

    Reproduces _forward: per-embedder Bernoulli(1 - dropout_rate) per-sample keep
    mask -> batch_mul -> embedder (identity for TextAttr) -> concat 'crossattn_emb'
    outputs along dim 1.  The mask-multiply + concat run inside the Pallas kernel.
    """

    KEY2DIM = {"crossattn_emb": 1}

    def __init__(self, **emb_models):
        self.embedders = dict(emb_models)

    def _gather(self, batch):
        return [batch[emb.input_key] for emb in self.embedders.values()]

    def forward(self, batch, override_dropout_rate=None, *, rng_key):
        if override_dropout_rate is None:
            override_dropout_rate = {}
        for name in override_dropout_rate:
            assert name in self.embedders, f"invalid name found {name}"

        toks, keeps = [], []
        for emb_name, embedder in self.embedders.items():
            tok = batch[embedder.input_key]  # (B, S, D)
            rate = override_dropout_rate.get(emb_name, embedder.dropout_rate)
            rng_key, sub = jax.random.split(rng_key)
            # torch.bernoulli((1 - rate) * ones(B)).type_as(x)
            keep = jax.random.bernoulli(
                sub, p=1.0 - float(rate), shape=(tok.shape[0],)
            ).astype(jnp.int32)
            toks.append(tok)
            keeps.append(keep)

        keep_masks = jnp.stack(keeps, axis=0)[None]  # (1, E, B) — tiny SMEM payload
        (crossattn,) = conditioner_pallas(toks, keep_masks)
        return {"crossattn_emb": crossattn}

    def get_condition_uncondition(self, batch, *, rng_key=None):
        # Dropout rates forced to 0.0 / 1.0 -> deterministic masks.  The kernel only
        # produces the conditioned slab (all-keep); the unconditioned slab is built
        # from cond slices + zeros at the JAX level so no bit-identical HBM writes
        # are duplicated inside the kernel.
        del rng_key
        toks = self._gather(batch)
        E = len(toks)
        B, S, _ = toks[0].shape

        cond_masks = jnp.ones((1, E, B), jnp.int32)
        (cond,) = conditioner_pallas(toks, cond_masks)

        kept = [emb.dropout_rate <= 1e-4 for emb in self.embedders.values()]
        if all(kept):
            uncond = cond
        elif not any(kept):
            uncond = jnp.zeros_like(cond)
        else:
            pieces = []
            for e, k in enumerate(kept):
                sl = cond[:, e * S : (e + 1) * S, :]
                pieces.append(sl if k else jnp.zeros_like(sl))
            uncond = jnp.concatenate(pieces, axis=1)
        return {"crossattn_emb": cond}, {"crossattn_emb": uncond}


# ---------------------------------------------------------------------------
# Self-test
# ---------------------------------------------------------------------------
if __name__ == "__main__":
    key = jax.random.PRNGKey(0)
    k_t5, k_aux, k_drop = jax.random.split(key, 3)

    B, S, D = 2, 8, 128  # small shapes; D=128 keeps the store path lane-dense

    batch = {
        "t5_text_embeddings": jax.random.normal(k_t5, (B, S, D), dtype=jnp.float32),
        "aux_text_embeddings": jax.random.normal(k_aux, (B, S, D), dtype=jnp.float32),
    }

    conditioner = GeneralConditionerJAX(
        text=TextAttrJAX(input_key="t5_text_embeddings", dropout_rate=0.2),
        aux_text=TextAttrJAX(input_key="aux_text_embeddings", dropout_rate=0.0),
    )

    # 1) stochastic default-rate forward (per-sample dropout on the 0.2-rate embedder)
    out = conditioner.forward(batch, rng_key=k_drop)
    x = jax.block_until_ready(out["crossattn_emb"])
    assert x.shape == (B, 2 * S, D)
    # each (embedder, sample) seq-slice must be either the original tokens or zeros
    for e, name in enumerate(["t5_text_embeddings", "aux_text_embeddings"]):
        blk = x[:, e * S : (e + 1) * S, :]
        tok = batch[name]
        for b in range(B):
            same = bool(jnp.allclose(blk[b], tok[b], atol=1e-6))
            zero = bool(jnp.allclose(blk[b], 0.0, atol=1e-6))
            assert same or zero

    # 2) deterministic forward: all dropout overridden to 0.0 -> identity concat
    out_id = conditioner.forward(
        batch, override_dropout_rate={"text": 0.0, "aux_text": 0.0}, rng_key=k_drop
    )
    ref_id = jnp.concatenate(
        [batch["t5_text_embeddings"], batch["aux_text_embeddings"]], axis=1
    )
    assert jnp.allclose(out_id["crossattn_emb"], ref_id, atol=1e-6)

    # 3) condition / uncondition pair (kernel runs once; uncond assembled from cond)
    cond, uncond = conditioner.get_condition_uncondition(batch, rng_key=k_drop)
    jax.block_until_ready(cond["crossattn_emb"])
    jax.block_until_ready(uncond["crossattn_emb"])

    ref_cond = ref_id
    ref_uncond = jnp.concatenate(
        [jnp.zeros_like(batch["t5_text_embeddings"]), batch["aux_text_embeddings"]],
        axis=1,
    )
    assert jnp.allclose(cond["crossattn_emb"], ref_cond, atol=1e-6)
    assert jnp.allclose(uncond["crossattn_emb"], ref_uncond, atol=1e-6)

    print("KERNEL_OK")
</pallas_src>

<mosaic_0001>
module attributes {stable_mosaic.version = 11 : i64} {
  func.func @_conditioner_kernel(%arg0: i32, %arg1: memref<4xi32, #tpu.memory_space<smem>>, %arg2: memref<2x8x128xf32, #tpu.memory_space<vmem>>, %arg3: memref<2x8x128xf32, #tpu.memory_space<vmem>>, %arg4: memref<2x2x8x128xf32, #tpu.memory_space<vmem>>) attributes {dimension_semantics = [#tpu.dimension_semantics<parallel>], iteration_bounds = array<i64: 1>, scalar_prefetch = 1 : i64, scratch_operands = 0 : i64, tpu.core_type = #tpu.core_type<tc>, window_params = [{transform_indices = @transform_0, window_bounds = array<i64: 2, 8, 128>}, {transform_indices = @transform_1, window_bounds = array<i64: 2, 8, 128>}, {transform_indices = @transform_2, window_bounds = array<i64: 2, 2, 8, 128>}]} {
    %c0 = arith.constant 0 : index
    %c0_0 = arith.constant 0 : index
    %c0_1 = arith.constant 0 : index
    %0 = vector.load %arg2[%c0, %c0_0, %c0_1] : memref<2x8x128xf32, #tpu.memory_space<vmem>>, vector<2x8x128xf32>
    %c0_2 = arith.constant 0 : index
    %1 = memref.load %arg1[%c0_2] : memref<4xi32, #tpu.memory_space<smem>>
    %2 = arith.sitofp %1 : i32 to f32
    %3 = vector.extract_strided_slice %0 {offsets = [0, 0, 0], sizes = [1, 8, 128], strides = [1, 1, 1]} : vector<2x8x128xf32> to vector<1x8x128xf32>
    %4 = vector.shape_cast %3 : vector<1x8x128xf32> to vector<8x128xf32>
    %5 = vector.broadcast %2 : f32 to vector<8x128xf32>
    %6 = arith.mulf %4, %5 : vector<8x128xf32>
    %c0_3 = arith.constant 0 : index
    %c0_4 = arith.constant 0 : index
    %c0_5 = arith.constant 0 : index
    %c0_6 = arith.constant 0 : index
    %7 = vector.load %arg4[%c0_3, %c0_4, %c0_5, %c0_6] : memref<2x2x8x128xf32, #tpu.memory_space<vmem>>, vector<1x1x8x128xf32>
    %8 = vector.shape_cast %7 : vector<1x1x8x128xf32> to vector<8x128xf32>
    %9 = vector.shape_cast %6 : vector<8x128xf32> to vector<1x1x8x128xf32>
    tpu.vector_store %arg4[%c0_3, %c0_4, %c0_5, %c0_6], %9 {strides = array<i32>} : memref<2x2x8x128xf32, #tpu.memory_space<vmem>>, vector<1x1x8x128xf32>,
    %c1 = arith.constant 1 : index
    %10 = memref.load %arg1[%c1] : memref<4xi32, #tpu.memory_space<smem>>
    %11 = arith.sitofp %10 : i32 to f32
    %12 = vector.extract_strided_slice %0 {offsets = [1, 0, 0], sizes = [1, 8, 128], strides = [1, 1, 1]} : vector<2x8x128xf32> to vector<1x8x128xf32>
    %13 = vector.shape_cast %12 : vector<1x8x128xf32> to vector<8x128xf32>
    %14 = vector.broadcast %11 : f32 to vector<8x128xf32>
    %15 = arith.mulf %13, %14 : vector<8x128xf32>
    %c1_7 = arith.constant 1 : index
    %c0_8 = arith.constant 0 : index
    %c0_9 = arith.constant 0 : index
    %c0_10 = arith.constant 0 : index
    %16 = vector.load %arg4[%c1_7, %c0_8, %c0_9, %c0_10] : memref<2x2x8x128xf32, #tpu.memory_space<vmem>>, vector<1x1x8x128xf32>
    %17 = vector.shape_cast %16 : vector<1x1x8x128xf32> to vector<8x128xf32>
    %18 = vector.shape_cast %15 : vector<8x128xf32> to vector<1x1x8x128xf32>
    tpu.vector_store %arg4[%c1_7, %c0_8, %c0_9, %c0_10], %18 {strides = array<i32>} : memref<2x2x8x128xf32, #tpu.memory_space<vmem>>, vector<1x1x8x128xf32>,
    %c0_11 = arith.constant 0 : index
    %c0_12 = arith.constant 0 : index
    %c0_13 = arith.constant 0 : index
    %19 = vector.load %arg3[%c0_11, %c0_12, %c0_13] : memref<2x8x128xf32, #tpu.memory_space<vmem>>, vector<2x8x128xf32>
    %c2 = arith.constant 2 : index
    %20 = memref.load %arg1[%c2] : memref<4xi32, #tpu.memory_space<smem>>
    %21 = arith.sitofp %20 : i32 to f32
    %22 = vector.extract_strided_slice %19 {offsets = [0, 0, 0], sizes = [1, 8, 128], strides = [1, 1, 1]} : vector<2x8x128xf32> to vector<1x8x128xf32>
    %23 = vector.shape_cast %22 : vector<1x8x128xf32> to vector<8x128xf32>
    %24 = vector.broadcast %21 : f32 to vector<8x128xf32>
    %25 = arith.mulf %23, %24 : vector<8x128xf32>
    %c0_14 = arith.constant 0 : index
    %c1_15 = arith.constant 1 : index
    %c0_16 = arith.constant 0 : index
    %c0_17 = arith.constant 0 : index
    %26 = vector.load %arg4[%c0_14, %c1_15, %c0_16, %c0_17] : memref<2x2x8x128xf32, #tpu.memory_space<vmem>>, vector<1x1x8x128xf32>
    %27 = vector.shape_cast %26 : vector<1x1x8x128xf32> to vector<8x128xf32>
    %28 = vector.shape_cast %25 : vector<8x128xf32> to vector<1x1x8x128xf32>
    tpu.vector_store %arg4[%c0_14, %c1_15, %c0_16, %c0_17], %28 {strides = array<i32>} : memref<2x2x8x128xf32, #tpu.memory_space<vmem>>, vector<1x1x8x128xf32>,
    %c3 = arith.constant 3 : index
    %29 = memref.load %arg1[%c3] : memref<4xi32, #tpu.memory_space<smem>>
    %30 = arith.sitofp %29 : i32 to f32
    %31 = vector.extract_strided_slice %19 {offsets = [1, 0, 0], sizes = [1, 8, 128], strides = [1, 1, 1]} : vector<2x8x128xf32> to vector<1x8x128xf32>
    %32 = vector.shape_cast %31 : vector<1x8x128xf32> to vector<8x128xf32>
    %33 = vector.broadcast %30 : f32 to vector<8x128xf32>
    %34 = arith.mulf %32, %33 : vector<8x128xf32>
    %c1_18 = arith.constant 1 : index
    %c1_19 = arith.constant 1 : index
    %c0_20 = arith.constant 0 : index
    %c0_21 = arith.constant 0 : index
    %35 = vector.load %arg4[%c1_18, %c1_19, %c0_20, %c0_21] : memref<2x2x8x128xf32, #tpu.memory_space<vmem>>, vector<1x1x8x128xf32>
    %36 = vector.shape_cast %35 : vector<1x1x8x128xf32> to vector<8x128xf32>
    %37 = vector.shape_cast %34 : vector<8x128xf32> to vector<1x1x8x128xf32>
    tpu.vector_store %arg4[%c1_18, %c1_19, %c0_20, %c0_21], %37 {strides = array<i32>} : memref<2x2x8x128xf32, #tpu.memory_space<vmem>>, vector<1x1x8x128xf32>,
    return
  }
  func.func @transform_0(%arg0: i32, %arg1: memref<4xi32, #tpu.memory_space<smem>>) -> (i32, i32, i32) {
    %c0_i32 = arith.constant 0 : i32
    %c0_i32_0 = arith.constant 0 : i32
    %c0_i32_1 = arith.constant 0 : i32
    return %c0_i32, %arg0, %c0_i32_0 : i32, i32, i32
  }
  func.func @transform_1(%arg0: i32, %arg1: memref<4xi32, #tpu.memory_space<smem>>) -> (i32, i32, i32) {
    %c0_i32 = arith.constant 0 : i32
    %c0_i32_0 = arith.constant 0 : i32
    %c0_i32_1 = arith.constant 0 : i32
    return %c0_i32, %arg0, %c0_i32_0 : i32, i32, i32
  }
  func.func @transform_2(%arg0: i32, %arg1: memref<4xi32, #tpu.memory_space<smem>>) -> (i32, i32, i32, i32) {
    %c0_i32 = arith.constant 0 : i32
    %c0_i32_0 = arith.constant 0 : i32
    %c0_i32_1 = arith.constant 0 : i32
    %c0_i32_2 = arith.constant 0 : i32
    return %c0_i32, %c0_i32_0, %arg0, %c0_i32_1 : i32, i32, i32, i32
  }
}

</mosaic_0001>

<llo_original>
// kernel: _conditioner_call.1
$region0: #{_conditioner_call.1}
  #allocation0 [shape = 'u32[]', space=smem, size = 0x4, offset = 0x4, fixed_abs, tag = 'smem constant byte address 0x4 - core index']
  #allocation1 [shape = 'u32[144,128]{1,0:T(1,128)}', space=vmem, size = 0x12000, scoped, tag = 'internal scratch']
  #allocation2 [shape = 's32[1]{0}', space=sflag, size = 0x4, scoped, tag = 'scoped memory for _conditioner_call.1']
  #allocation3 [shape = 'u8[512]{0}', space=smem, size = 0x200, scoped, tag = 'prefetched SMEM operand 0']
  %s0 = inlined_call_operand.vmem [shape: s32[4], index: 0, kind: input, shape index: {}]
  %s1 = inlined_call_operand.hbm [shape: f32[2,8,128], index: 1, kind: input, shape index: {}]
  %s2 = inlined_call_operand.hbm [shape: f32[2,8,128], index: 2, kind: input, shape index: {}]
  %s3 = inlined_call_operand.hbm [shape: f32[2,2,8,128], index: 3, kind: output, shape index: {}]
  %s4 = sld [smem:[#allocation0]]
  $region26: #{_conditioner_call.1} parent=0
    _
  %s6 = ssub.s32 1, %s4
  %s7 = scalar_select 0, %s6, %s4
  %s8 = sshll.u32 %s0, 4
  %s9 = int_to_ptr.vmem [resolvable:$true] %s8
  %11 = dma.vmem_to_smem %s9, 16, [#allocation3], [#allocation2]
  %12 = dma.done [#allocation2], 16
  %13 = sfence
  $region1: #{_conditioner_call.1} parent=0
    #allocation4 [shape = 'u8[8192]{0}', space=vmem, size = 0x2000, scoped, tag = 'input window, operand 1, single buffered']
    #allocation5 [shape = 's32[1]{0}', space=sflag, size = 0x4, scoped, tag = 'scoped memory for _conditioner_call.1']
    #allocation6 [shape = 's32[1]{0}', space=sflag, size = 0x4, scoped, tag = 'scoped memory for _conditioner_call.1']
    #allocation7 [shape = 'u8[8192]{0}', space=vmem, size = 0x2000, scoped, tag = 'input window, operand 2, single buffered']
    #allocation8 [shape = 's32[1]{0}', space=sflag, size = 0x4, scoped, tag = 'scoped memory for _conditioner_call.1']
    #allocation9 [shape = 'u8[16384]{0}', space=vmem, size = 0x4000, scoped, tag = 'output window, operand 0, single buffered']
    %14 = vsyncpa [#allocation5], 0
    %15 = vsyncpa [#allocation8], 0
    %16 = vsyncpa [#allocation6], 0
    // Predicated region
    $region2: #{_conditioner_call.1} parent=1 // pred_check
      _
    $region3: #{_conditioner_call.1} parent=1 // pred_check_branch
      %18 = sbr.rel (0) target = $region5
    $region4: #{_conditioner_call.1} parent=1 // pred_region
      %s20 = ssub.s32 256, 256
      %21 = vsyncadd [#allocation5], %s20
      %s22 = sshll.u32 [#allocation4], 4
      %s23 = int_to_ptr.vmem [resolvable:$true] %s22
      %28 = dma.hbm_to_vmem [thread:$0]  %s1, 256, %s23, [#allocation5], 128, 128, 8
    $region5: #{_conditioner_call.1} parent=1 // pred_fallthru
      _
    // Predicated region
    $region6: #{_conditioner_call.1} parent=1 // pred_check
      _
    $region7: #{_conditioner_call.1} parent=1 // pred_check_branch
      %30 = sbr.rel (0) target = $region9
    $region8: #{_conditioner_call.1} parent=1 // pred_region
      %s32 = ssub.s32 256, 256
      %33 = vsyncadd [#allocation8], %s32
      %s34 = sshll.u32 [#allocation7], 4
      %s35 = int_to_ptr.vmem [resolvable:$true] %s34
      %40 = dma.hbm_to_vmem [thread:$0]  %s2, 256, %s35, [#allocation8], 128, 128, 8
    $region9: #{_conditioner_call.1} parent=1 // pred_fallthru
      _
    // Predicated region
    $region10: #{_conditioner_call.1} parent=1 // pred_check
      _
    $region11: #{_conditioner_call.1} parent=1 // pred_check_branch
      %42 = sbr.rel (0) target = $region13
    $region12: #{_conditioner_call.1} parent=1 // pred_region
      %43 = dma.done [#allocation5], 256
    $region13: #{_conditioner_call.1} parent=1 // pred_fallthru
      _
    // Predicated region
    $region14: #{_conditioner_call.1} parent=1 // pred_check
      _
    $region15: #{_conditioner_call.1} parent=1 // pred_check_branch
      %45 = sbr.rel (0) target = $region17
    $region16: #{_conditioner_call.1} parent=1 // pred_region
      %46 = dma.done [#allocation8], 256
    $region17: #{_conditioner_call.1} parent=1 // pred_fallthru
      _
    %v47 = vld [vmem:[#allocation4] sm:$0xff]
    %v48 = vld [vmem:[#allocation4 + $0x8] sm:$0xff]
    %s49 = sld [smem:[#allocation3]]
    %s50 = scvt.s32.f32 %s49
    %v51 = vstv %s50
    %v52 = vmul.f32 %v47, %v51
    %53 = vst [vmem:[#allocation9] sm:$0xff] %v52
    %s54 = sld [smem:[#allocation3 + $0x1]]
    %s55 = scvt.s32.f32 %s54
    %v56 = vstv %s55
    %v57 = vmul.f32 %v48, %v56
    %s58 = scalar_lea.vmem [#allocation9], 16
    %59 = vst [vmem:[%s58] sm:$0xff] %v57
    %v60 = vld [vmem:[#allocation7] sm:$0xff]
    %v61 = vld [vmem:[#allocation7 + $0x8] sm:$0xff]
    %s62 = sld [smem:[#allocation3 + $0x2]]
    %s63 = scvt.s32.f32 %s62
    %v64 = vstv %s63
    %v65 = vmul.f32 %v60, %v64
    %s66 = scalar_lea.vmem [#allocation9], 8
    %67 = vst [vmem:[%s66] sm:$0xff] %v65
    %s68 = sld [smem:[#allocation3 + $0x3]]
    %s69 = scvt.s32.f32 %s68
    %v70 = vstv %s69
    %v71 = vmul.f32 %v61, %v70
    %s72 = scalar_lea.vmem [#allocation9], 24
    %73 = vst [vmem:[%s72] sm:$0xff] %v71
    // Predicated region
    $region18: #{_conditioner_call.1} parent=1 // pred_check
      _
    $region19: #{_conditioner_call.1} parent=1 // pred_check_branch
      %75 = sbr.rel (0) target = $region21
    $region20: #{_conditioner_call.1} parent=1 // pred_region
      %s77 = ssub.s32 512, 512
      %78 = vsyncadd [#allocation6], %s77
      %s79 = sshll.u32 [#allocation9], 4
      %s80 = int_to_ptr.vmem [resolvable:$true] %s79
      %85 = dma.vmem_to_hbm [thread:$0]  %s80, 512, %s3, [#allocation6], 128, 128, 8
    $region21: #{_conditioner_call.1} parent=1 // pred_fallthru
      _
    // Predicated region
    $region22: #{_conditioner_call.1} parent=1 // pred_check
      _
    $region23: #{_conditioner_call.1} parent=1 // pred_check_branch
      %87 = sbr.rel (0) target = $region25
    $region24: #{_conditioner_call.1} parent=1 // pred_region
      %88 = dma.done [#allocation6], 512
    $region25: #{_conditioner_call.1} parent=1 // pred_fallthru
      _
    %89 = vsyncpa [#allocation5], 1
    %90 = vsyncpa [#allocation8], 1
    %91 = vsyncpa [#allocation6], 1

</llo_original>
